<compile_context>
chip_gen: v6e
topology: v6e:2x2x1
jax: 0.10.0
libtpu: 0.0.40
codegen_flags: <defaults>
</compile_context>

<pallas_src>
import functools

import jax
import jax.numpy as jnp
from jax.experimental import pallas as pl
from jax.experimental.pallas import tpu as pltpu

EPS = 1e-12  # torch F.normalize default eps


def dlgconv_kernel(adj_ref, fhi_ref, flo_ref, sel_ref, o_ref, acc_ref):
    # adj_ref: (tn, tk) bf16  edge-count tile (src rows x dst cols)
    # fhi_ref/flo_ref: (tk, D) bf16  hi/lo split of the f32 embedding tile
    # sel_ref: (D, D) bf16  selector S[d,e] = 1 iff d % dk == e % dk
    # o_ref:   (tn, D) f32   aggregated + L2-normalized (over K) messages
    # acc_ref: (tn, D) f32   VMEM accumulator across the contraction grid axis
    k = pl.program_id(1)

    @pl.when(k == 0)
    def _():
        acc_ref[...] = jnp.zeros_like(acc_ref)

    # --- aggregation: scatter_add(f_in[dst], src) == A @ f -------------------
    # Two single-pass bf16 MXU matmuls (hi + lo) reproduce f32-level accuracy
    # without the 6-pass Precision.HIGHEST emulation.
    a = adj_ref[...]
    acc_ref[...] += (
        jnp.dot(a, fhi_ref[...], preferred_element_type=jnp.float32)
        + jnp.dot(a, flo_ref[...], preferred_element_type=jnp.float32))

    # --- F.normalize(m)  (p=2, dim=1 i.e. over the K factors) ----------------
    @pl.when(k == pl.num_programs(1) - 1)
    def _():
        m = acc_ref[...]                                   # (tn, D) f32
        msq = m * m
        # hi/lo split keeps the selector matmul at ~f32 accuracy on the MXU.
        msq_hi = msq.astype(jnp.bfloat16)
        msq_lo = (msq - msq_hi.astype(jnp.float32)).astype(jnp.bfloat16)
        sel = sel_ref[...]
        norm_sq = (jnp.dot(msq_hi, sel, preferred_element_type=jnp.float32)
                   + jnp.dot(msq_lo, sel, preferred_element_type=jnp.float32))
        # 1 / max(sqrt(x), eps) == rsqrt(max(x, eps^2)); rsqrt runs on the EUP.
        inv = jax.lax.rsqrt(jnp.maximum(norm_sq, EPS * EPS))
        # TODO(synk): D=32 < 128 lanes -> masked vst; for real configs fuse the
        # downstream per-factor update matmul (or transpose) for lane-dense stores.
        o_ref[...] = (m * inv).astype(o_ref.dtype)


def dlgconv_forward(f_in, edges, *, tn=None, tk=None):
    """DLGConv.forward with aggr_type='sum'.

    f_in:  (N, K, dk) float32 disentangled node embeddings
    edges: (E, 2) int32, columns [src, dst]
    returns (N, K, dk) float32
    """
    N, K, dk = f_in.shape
    D = K * dk
    src, dst = edges[:, 0], edges[:, 1]

    # Glue: edge list -> dense edge-count matrix.  Built in f32, cast to bf16:
    # exact as long as per-(src, dst) edge multiplicity <= 256.
    adj = jnp.zeros((N, N), jnp.float32).at[src, dst].add(1.0).astype(jnp.bfloat16)
    # TODO(synk): for large sparse graphs replace the dense N x N adjacency with
    # a scalar-prefetched CSR gather (PrefetchScalarGridSpec num_scalar_prefetch
    # + manual DMA); dense is O(N^2 * D) FLOPs/bytes vs O(E * D) for scatter_add.

    # Exact-ish bf16 hi/lo split of the f32 embeddings for the MXU.
    f_flat = f_in.reshape(N, D).astype(jnp.float32)
    f_hi = f_flat.astype(jnp.bfloat16)
    f_lo = (f_flat - f_hi.astype(jnp.float32)).astype(jnp.bfloat16)

    # Selector for L2 over the K-factor axis in the flattened layout:
    # S[d, e] = 1 iff d % dk == e % dk, so (m*m) @ S gives the squared norm
    # already broadcast back to (., D).
    pos = jnp.arange(D, dtype=jnp.int32) % dk
    sel = (pos[:, None] == pos[None, :]).astype(jnp.bfloat16)

    # Tile sizes: big node tiles to fill the MXU, contraction-axis tiling to
    # keep VMEM bounded as N grows (re-derive for v7x's 64 MiB VMEM).
    if tn is None:
        tn = min(N, 256)
    if tk is None:
        tk = min(N, 512)
    assert N % tn == 0 and N % tk == 0, "N must be divisible by tn and tk"
    assert tn == N or tn % 8 == 0
    assert tk == N or tk % 128 == 0

    out_flat = pl.pallas_call(
        dlgconv_kernel,
        out_shape=jax.ShapeDtypeStruct((N, D), jnp.float32),
        grid_spec=pltpu.PrefetchScalarGridSpec(
            num_scalar_prefetch=0,
            grid=(N // tn, N // tk),                         # (node tiles, reduction tiles)
            in_specs=[
                pl.BlockSpec((tn, tk), lambda i, k: (i, k)),  # adjacency tile
                pl.BlockSpec((tk, D), lambda i, k: (k, 0)),   # f_hi tile
                pl.BlockSpec((tk, D), lambda i, k: (k, 0)),   # f_lo tile
                pl.BlockSpec((D, D), lambda i, k: (0, 0)),    # selector (constant)
            ],
            out_specs=pl.BlockSpec((tn, D), lambda i, k: (i, 0)),
            scratch_shapes=[pltpu.VMEM((tn, D), jnp.float32)],
        ),
        compiler_params=pltpu.CompilerParams(
            dimension_semantics=("parallel", "arbitrary"),
            vmem_limit_bytes=64 * 1024 * 1024,
        ),
    )(adj, f_hi, f_lo, sel)
    return out_flat.reshape(N, K, dk).astype(f_in.dtype)


def dlgconv_forward_ref(f_in, edges):
    """Plain-JAX reference matching the PyTorch semantics (aggr_type='sum')."""
    src, dst = edges[:, 0], edges[:, 1]
    m = jnp.zeros_like(f_in).at[src].add(f_in[dst])            # scatter_add
    norm = jnp.sqrt(jnp.sum(m * m, axis=1, keepdims=True))     # L2 over dim=1 (K)
    return m / jnp.maximum(norm, EPS)


if __name__ == "__main__":
    # DLGConv(in_dim=32, out_dim=32, num_factors=4, act_fn=None, aggr_type='sum')
    N, K, d_in, d_out, E = 128, 4, 32, 32, 512
    dk = d_in // K

    key = jax.random.PRNGKey(0)
    k_f, k_e, k_w = jax.random.split(key, 3)

    f_in = jax.random.normal(k_f, (N, K, dk), dtype=jnp.float32)
    edges = jax.random.randint(k_e, (E, 2), 0, N, dtype=jnp.int32)

    # Deterministic parameter init mirroring setup_layers() (xavier-uniform-like).
    # NOTE: these parameters are never used in DLGConv.forward() for aggr_type
    # in {'sum', 'mean'}; they are initialized here only for shape fidelity.
    fan = 2 * dk + d_out // K
    bound = (6.0 / fan) ** 0.5
    disen_update_weights = jax.random.uniform(
        k_w, (K, 2 * dk, d_out // K), minval=-bound, maxval=bound, dtype=jnp.float32)
    disen_update_bias = jnp.zeros((1, K, dk), dtype=jnp.float32)

    # TODO(synk): 'attn' and 'max' aggregation branches in the reference module
    # reference an undefined `neigh_type_idx` (NameError in PyTorch), so only
    # the working 'sum' path is implemented here.

    f_out = jax.block_until_ready(dlgconv_forward(f_in, edges))

    f_ref = dlgconv_forward_ref(f_in, edges)
    assert f_out.shape == (N, K, dk)
    assert jnp.allclose(f_out, f_ref, rtol=1e-4, atol=1e-4), "mismatch vs reference"

    print("KERNEL_OK")
</pallas_src>

<mosaic_0001>
module attributes {stable_mosaic.version = 11 : i64} {
  func.func @dlgconv_kernel(%arg0: i32, %arg1: i32, %arg2: memref<128x128xbf16, #tpu.memory_space<vmem>>, %arg3: memref<128x32xbf16, #tpu.memory_space<vmem>>, %arg4: memref<128x32xbf16, #tpu.memory_space<vmem>>, %arg5: memref<32x32xbf16, #tpu.memory_space<vmem>>, %arg6: memref<128x32xf32, #tpu.memory_space<vmem>>, %arg7: memref<128x32xf32, #tpu.memory_space<vmem>>) attributes {dimension_semantics = [#tpu.dimension_semantics<parallel>, #tpu.dimension_semantics<arbitrary>], iteration_bounds = array<i64: 1, 1>, scalar_prefetch = 0 : i64, scratch_operands = 1 : i64, tpu.core_type = #tpu.core_type<tc>, window_params = [{transform_indices = @transform_0, window_bounds = array<i64: 128, 128>}, {transform_indices = @transform_1, window_bounds = array<i64: 128, 32>}, {transform_indices = @transform_2, window_bounds = array<i64: 128, 32>}, {pipeline_mode = #tpu.pipeline_mode<synchronous>, transform_indices = @transform_3, window_bounds = array<i64: 32, 32>}, {transform_indices = @transform_4, window_bounds = array<i64: 128, 32>}]} {
    %c0_i32 = arith.constant 0 : i32
    %0 = arith.cmpi eq, %arg1, %c0_i32 : i32
    %1 = arith.extui %0 : i1 to i32
    %c0_i32_0 = arith.constant 0 : i32
    %2 = arith.cmpi ne, %1, %c0_i32_0 : i32
    scf.if %2 {
      %cst_13 = arith.constant 0.000000e+00 : f32
      %15 = vector.broadcast %cst_13 : f32 to vector<128x32xf32>
      %c0_14 = arith.constant 0 : index
      %c0_15 = arith.constant 0 : index
      %16 = vector.load %arg7[%c0_14, %c0_15] : memref<128x32xf32, #tpu.memory_space<vmem>>, vector<128x32xf32>
      tpu.vector_store %arg7[%c0_14, %c0_15], %15 {strides = array<i32>} : memref<128x32xf32, #tpu.memory_space<vmem>>, vector<128x32xf32>,
    } else {
    }
    %c0 = arith.constant 0 : index
    %c0_1 = arith.constant 0 : index
    %3 = vector.load %arg2[%c0, %c0_1] : memref<128x128xbf16, #tpu.memory_space<vmem>>, vector<128x128xbf16>
    %c0_2 = arith.constant 0 : index
    %c0_3 = arith.constant 0 : index
    %4 = vector.load %arg7[%c0_2, %c0_3] : memref<128x32xf32, #tpu.memory_space<vmem>>, vector<128x32xf32>
    %c0_4 = arith.constant 0 : index
    %c0_5 = arith.constant 0 : index
    %5 = vector.load %arg3[%c0_4, %c0_5] : memref<128x32xbf16, #tpu.memory_space<vmem>>, vector<128x32xbf16>
    %cst = arith.constant dense<0.000000e+00> : vector<128x32xf32>
    %6 = tpu.matmul %3, %5, %cst {dimension_numbers = #tpu.dot_dimension_numbers<[1], [0], [0], [1], [0, 0, 1, 1], [], []>} : vector<128x128xbf16>, vector<128x32xbf16>, vector<128x32xf32> -> vector<128x32xf32>
    %c0_6 = arith.constant 0 : index
    %c0_7 = arith.constant 0 : index
    %7 = vector.load %arg4[%c0_6, %c0_7] : memref<128x32xbf16, #tpu.memory_space<vmem>>, vector<128x32xbf16>
    %cst_8 = arith.constant dense<0.000000e+00> : vector<128x32xf32>
    %8 = tpu.matmul %3, %7, %cst_8 {dimension_numbers = #tpu.dot_dimension_numbers<[1], [0], [0], [1], [0, 0, 1, 1], [], []>} : vector<128x128xbf16>, vector<128x32xbf16>, vector<128x32xf32> -> vector<128x32xf32>
    %9 = arith.addf %6, %8 : vector<128x32xf32>
    %10 = arith.addf %4, %9 : vector<128x32xf32>
    %c0_9 = arith.constant 0 : index
    %c0_10 = arith.constant 0 : index
    %11 = vector.load %arg7[%c0_9, %c0_10] : memref<128x32xf32, #tpu.memory_space<vmem>>, vector<128x32xf32>
    tpu.vector_store %arg7[%c0_9, %c0_10], %10 {strides = array<i32>} : memref<128x32xf32, #tpu.memory_space<vmem>>, vector<128x32xf32>,
    %c0_i32_11 = arith.constant 0 : i32
    %12 = arith.cmpi eq, %arg1, %c0_i32_11 : i32
    %13 = arith.extui %12 : i1 to i32
    %c0_i32_12 = arith.constant 0 : i32
    %14 = arith.cmpi ne, %13, %c0_i32_12 : i32
    scf.if %14 {
      %c0_13 = arith.constant 0 : index
      %c0_14 = arith.constant 0 : index
      %15 = vector.load %arg7[%c0_13, %c0_14] : memref<128x32xf32, #tpu.memory_space<vmem>>, vector<128x32xf32>
      %16 = arith.mulf %15, %15 : vector<128x32xf32>
      %17 = arith.truncf %16 : vector<128x32xf32> to vector<128x32xbf16>
      %18 = arith.extf %17 : vector<128x32xbf16> to vector<128x32xf32>
      %19 = arith.subf %16, %18 : vector<128x32xf32>
      %20 = arith.truncf %19 : vector<128x32xf32> to vector<128x32xbf16>
      %c0_15 = arith.constant 0 : index
      %c0_16 = arith.constant 0 : index
      %21 = vector.load %arg5[%c0_15, %c0_16] : memref<32x32xbf16, #tpu.memory_space<vmem>>, vector<32x32xbf16>
      %cst_17 = arith.constant dense<0.000000e+00> : vector<128x32xf32>
      %22 = tpu.matmul %17, %21, %cst_17 {dimension_numbers = #tpu.dot_dimension_numbers<[1], [0], [0], [1], [0, 0, 1, 1], [], []>} : vector<128x32xbf16>, vector<32x32xbf16>, vector<128x32xf32> -> vector<128x32xf32>
      %cst_18 = arith.constant dense<0.000000e+00> : vector<128x32xf32>
      %23 = tpu.matmul %20, %21, %cst_18 {dimension_numbers = #tpu.dot_dimension_numbers<[1], [0], [0], [1], [0, 0, 1, 1], [], []>} : vector<128x32xbf16>, vector<32x32xbf16>, vector<128x32xf32> -> vector<128x32xf32>
      %24 = arith.addf %22, %23 : vector<128x32xf32>
      %cst_19 = arith.constant 1.000000e-24 : f32
      %25 = vector.broadcast %cst_19 : f32 to vector<128x32xf32>
      %26 = arith.maximumf %24, %25 : vector<128x32xf32>
      %27 = math.rsqrt %26 : vector<128x32xf32>
      %28 = arith.mulf %15, %27 : vector<128x32xf32>
      %c0_20 = arith.constant 0 : index
      %c0_21 = arith.constant 0 : index
      %29 = vector.load %arg6[%c0_20, %c0_21] : memref<128x32xf32, #tpu.memory_space<vmem>>, vector<128x32xf32>
      tpu.vector_store %arg6[%c0_20, %c0_21], %28 {strides = array<i32>} : memref<128x32xf32, #tpu.memory_space<vmem>>, vector<128x32xf32>,
    } else {
    }
    return
  }
  func.func @transform_0(%arg0: i32, %arg1: i32) -> (i32, i32) {
    %c0_i32 = arith.constant 0 : i32
    return %arg0, %arg1 : i32, i32
  }
  func.func @transform_1(%arg0: i32, %arg1: i32) -> (i32, i32) {
    %c0_i32 = arith.constant 0 : i32
    %c0_i32_0 = arith.constant 0 : i32
    return %arg1, %c0_i32 : i32, i32
  }
  func.func @transform_2(%arg0: i32, %arg1: i32) -> (i32, i32) {
    %c0_i32 = arith.constant 0 : i32
    %c0_i32_0 = arith.constant 0 : i32
    return %arg1, %c0_i32 : i32, i32
  }
  func.func @transform_3(%arg0: i32, %arg1: i32) -> (i32, i32) {
    %c0_i32 = arith.constant 0 : i32
    %c0_i32_0 = arith.constant 0 : i32
    %c0_i32_1 = arith.constant 0 : i32
    return %c0_i32, %c0_i32_0 : i32, i32
  }
  func.func @transform_4(%arg0: i32, %arg1: i32) -> (i32, i32) {
    %c0_i32 = arith.constant 0 : i32
    %c0_i32_0 = arith.constant 0 : i32
    return %arg0, %c0_i32 : i32, i32
  }
}

</mosaic_0001>

<llo_original>
// kernel: tpu_custom_call.1
$region0: #{tpu_custom_call.1}
  #allocation0 [shape = 'u32[]', space=smem, size = 0x4, offset = 0x4, fixed_abs, tag = 'smem constant byte address 0x4 - core index']
  #allocation1 [shape = 'u32[144,128]{1,0:T(1,128)}', space=vmem, size = 0x12000, scoped, tag = 'internal scratch']
  #allocation2 [shape = 'f32[128,32]{1,0:T(8,128)}', space=vmem, size = 0x10000, scoped, tag = 'scratch operand']
  %s0 = inlined_call_operand.vmem [shape: bf16[128,128], index: 0, kind: input, shape index: {}]
  %s1 = inlined_call_operand.vmem [shape: bf16[128,32], index: 1, kind: input, shape index: {}]
  %s2 = inlined_call_operand.vmem [shape: bf16[128,32], index: 2, kind: input, shape index: {}]
  %s3 = inlined_call_operand.vmem [shape: bf16[32,32], index: 3, kind: input, shape index: {}]
  %s4 = inlined_call_operand.vmem [shape: f32[128,32], index: 4, kind: output, shape index: {}]
  %s5 = sld [smem:[#allocation0]]
  $region34: #{tpu_custom_call.1} parent=0
    _
  %s7 = ssub.s32 1, %s5
  %s8 = scalar_select 0, %s7, %s5
  // Predicated region
  $region2: #{tpu_custom_call.1} parent=0 // pred_check
    _
  $region3: #{tpu_custom_call.1} parent=0 // pred_check_branch
    %10 = sbr.rel (0) target = $region5
  $region4: #{tpu_custom_call.1} parent=0 // pred_region
    _
  $region5: #{tpu_custom_call.1} parent=0 // pred_fallthru
    _
  // Predicated region
  $region6: #{tpu_custom_call.1} parent=0 // pred_check
    _
  $region7: #{tpu_custom_call.1} parent=0 // pred_check_branch
    %12 = sbr.rel (0) target = $region9
  $region8: #{tpu_custom_call.1} parent=0 // pred_region
    _
  $region9: #{tpu_custom_call.1} parent=0 // pred_fallthru
    _
  // Predicated region
  $region10: #{tpu_custom_call.1} parent=0 // pred_check
    _
  $region11: #{tpu_custom_call.1} parent=0 // pred_check_branch
    %14 = sbr.rel (0) target = $region13
  $region12: #{tpu_custom_call.1} parent=0 // pred_region
    _
  $region13: #{tpu_custom_call.1} parent=0 // pred_fallthru
    _
  // Predicated region
  $region14: #{tpu_custom_call.1} parent=0 // pred_check
    _
  $region15: #{tpu_custom_call.1} parent=0 // pred_check_branch
    %16 = sbr.rel (0) target = $region17
  $region16: #{tpu_custom_call.1} parent=0 // pred_region
    _
  $region17: #{tpu_custom_call.1} parent=0 // pred_fallthru
    _
  %p18 = scmp.eq.s32.totalorder 0, 0
  // Predicated region
  $region18: #{tpu_custom_call.1} parent=0 // pred_check
    %p19 = pneg %p18
  $region19: #{tpu_custom_call.1} parent=0 // pred_check_branch
    %21 = sbr.rel (%p19) target = $region21
  $region20: #{tpu_custom_call.1} parent=0 // pred_region
    %vm22 = vcmask 261120
    %23 = vst.msk [vmem:[#allocation2] sm:$0xff] %vm22, 0.0
    %24 = vst.msk [vmem:[#allocation2 + $0x8] sm:$0xff] %vm22, 0.0
    %25 = vst.msk [vmem:[#allocation2 + $0x10] sm:$0xff] %vm22, 0.0
    %26 = vst.msk [vmem:[#allocation2 + $0x18] sm:$0xff] %vm22, 0.0
    %27 = vst.msk [vmem:[#allocation2 + $0x20] sm:$0xff] %vm22, 0.0
    %28 = vst.msk [vmem:[#allocation2 + $0x28] sm:$0xff] %vm22, 0.0
    %29 = vst.msk [vmem:[#allocation2 + $0x30] sm:$0xff] %vm22, 0.0
    %30 = vst.msk [vmem:[#allocation2 + $0x38] sm:$0xff] %vm22, 0.0
    %31 = vst.msk [vmem:[#allocation2 + $0x40] sm:$0xff] %vm22, 0.0
    %32 = vst.msk [vmem:[#allocation2 + $0x48] sm:$0xff] %vm22, 0.0
    %33 = vst.msk [vmem:[#allocation2 + $0x50] sm:$0xff] %vm22, 0.0
    %34 = vst.msk [vmem:[#allocation2 + $0x58] sm:$0xff] %vm22, 0.0
    %35 = vst.msk [vmem:[#allocation2 + $0x60] sm:$0xff] %vm22, 0.0
    %36 = vst.msk [vmem:[#allocation2 + $0x68] sm:$0xff] %vm22, 0.0
    %37 = vst.msk [vmem:[#allocation2 + $0x70] sm:$0xff] %vm22, 0.0
    %38 = vst.msk [vmem:[#allocation2 + $0x78] sm:$0xff] %vm22, 0.0
  $region21: #{tpu_custom_call.1} parent=0 // pred_fallthru
    _
  %v39 = vld [vmem:[%s0] sm:$0xf]
  %v40 = vld [vmem:[%s0 + $0x4] sm:$0xf]
  %v41 = vld [vmem:[%s0 + $0x8] sm:$0xf]
  %v42 = vld [vmem:[%s0 + $0xc] sm:$0xf]
  %v43 = vld [vmem:[%s0 + $0x10] sm:$0xf]
  %v44 = vld [vmem:[%s0 + $0x14] sm:$0xf]
  %v45 = vld [vmem:[%s0 + $0x18] sm:$0xf]
  %v46 = vld [vmem:[%s0 + $0x1c] sm:$0xf]
  %v47 = vld [vmem:[%s0 + $0x20] sm:$0xf]
  %v48 = vld [vmem:[%s0 + $0x24] sm:$0xf]
  %v49 = vld [vmem:[%s0 + $0x28] sm:$0xf]
  %v50 = vld [vmem:[%s0 + $0x2c] sm:$0xf]
  %v51 = vld [vmem:[%s0 + $0x30] sm:$0xf]
  %v52 = vld [vmem:[%s0 + $0x34] sm:$0xf]
  %v53 = vld [vmem:[%s0 + $0x38] sm:$0xf]
  %v54 = vld [vmem:[%s0 + $0x3c] sm:$0xf]
  %v55 = vld [vmem:[#allocation2] sm:$0xff]
  %v56 = vld [vmem:[#allocation2 + $0x8] sm:$0xff]
  %v57 = vld [vmem:[#allocation2 + $0x10] sm:$0xff]
  %v58 = vld [vmem:[#allocation2 + $0x18] sm:$0xff]
  %v59 = vld [vmem:[#allocation2 + $0x20] sm:$0xff]
  %v60 = vld [vmem:[#allocation2 + $0x28] sm:$0xff]
  %v61 = vld [vmem:[#allocation2 + $0x30] sm:$0xff]
  %v62 = vld [vmem:[#allocation2 + $0x38] sm:$0xff]
  %v63 = vld [vmem:[#allocation2 + $0x40] sm:$0xff]
  %v64 = vld [vmem:[#allocation2 + $0x48] sm:$0xff]
  %v65 = vld [vmem:[#allocation2 + $0x50] sm:$0xff]
  %v66 = vld [vmem:[#allocation2 + $0x58] sm:$0xff]
  %v67 = vld [vmem:[#allocation2 + $0x60] sm:$0xff]
  %v68 = vld [vmem:[#allocation2 + $0x68] sm:$0xff]
  %v69 = vld [vmem:[#allocation2 + $0x70] sm:$0xff]
  %v70 = vld [vmem:[#allocation2 + $0x78] sm:$0xff]
  %v71 = vld [vmem:[%s1] sm:$0xf]
  %v72 = vld [vmem:[%s1 + $0x4] sm:$0xf]
  %v73 = vld [vmem:[%s1 + $0x8] sm:$0xf]
  %v74 = vld [vmem:[%s1 + $0xc] sm:$0xf]
  %v75 = vld [vmem:[%s1 + $0x10] sm:$0xf]
  %v76 = vld [vmem:[%s1 + $0x14] sm:$0xf]
  %v77 = vld [vmem:[%s1 + $0x18] sm:$0xf]
  %v78 = vld [vmem:[%s1 + $0x1c] sm:$0xf]
  %v79 = vld [vmem:[%s1 + $0x20] sm:$0xf]
  %v80 = vld [vmem:[%s1 + $0x24] sm:$0xf]
  %v81 = vld [vmem:[%s1 + $0x28] sm:$0xf]
  %v82 = vld [vmem:[%s1 + $0x2c] sm:$0xf]
  %v83 = vld [vmem:[%s1 + $0x30] sm:$0xf]
  %v84 = vld [vmem:[%s1 + $0x34] sm:$0xf]
  %v85 = vld [vmem:[%s1 + $0x38] sm:$0xf]
  %v86 = vld [vmem:[%s1 + $0x3c] sm:$0xf]
  %v87 = vld [vmem:[%s2] sm:$0xf]
  %v88 = vld [vmem:[%s2 + $0x4] sm:$0xf]
  %v89 = vld [vmem:[%s2 + $0x8] sm:$0xf]
  %v90 = vld [vmem:[%s2 + $0xc] sm:$0xf]
  %v91 = vld [vmem:[%s2 + $0x10] sm:$0xf]
  %v92 = vld [vmem:[%s2 + $0x14] sm:$0xf]
  %v93 = vld [vmem:[%s2 + $0x18] sm:$0xf]
  %v94 = vld [vmem:[%s2 + $0x1c] sm:$0xf]
  %v95 = vld [vmem:[%s2 + $0x20] sm:$0xf]
  %v96 = vld [vmem:[%s2 + $0x24] sm:$0xf]
  %v97 = vld [vmem:[%s2 + $0x28] sm:$0xf]
  %v98 = vld [vmem:[%s2 + $0x2c] sm:$0xf]
  %v99 = vld [vmem:[%s2 + $0x30] sm:$0xf]
  %v100 = vld [vmem:[%s2 + $0x34] sm:$0xf]
  %v101 = vld [vmem:[%s2 + $0x38] sm:$0xf]
  %v102 = vld [vmem:[%s2 + $0x3c] sm:$0xf]
  %v119 = vunpack.c.l.b16 %v39
  %v120 = vunpack.c.l.b16 %v40
  %v121 = vunpack.c.l.b16 %v41
  %v122 = vunpack.c.l.b16 %v42
  %v123 = vunpack.c.l.b16 %v43
  %v124 = vunpack.c.l.b16 %v44
  %v125 = vunpack.c.l.b16 %v45
  %v126 = vunpack.c.l.b16 %v46
  %v127 = vunpack.c.l.b16 %v47
  %v128 = vunpack.c.l.b16 %v48
  %v129 = vunpack.c.l.b16 %v49
  %v130 = vunpack.c.l.b16 %v50
  %v131 = vunpack.c.l.b16 %v51
  %v132 = vunpack.c.l.b16 %v52
  %v133 = vunpack.c.l.b16 %v53
  %v134 = vunpack.c.l.b16 %v54
  %v135 = vpack.c.b16 %v120, %v119
  %v136 = vpack.c.b16 %v122, %v121
  %v137 = vpack.c.b16 %v124, %v123
  %v138 = vpack.c.b16 %v126, %v125
  %v139 = vpack.c.b16 %v128, %v127
  %v140 = vpack.c.b16 %v130, %v129
  %v141 = vpack.c.b16 %v132, %v131
  %v142 = vpack.c.b16 %v134, %v133
  %v167 = vunpack.c.l.b16 %v87
  %v168 = vunpack.c.l.b16 %v88
  %v169 = vunpack.c.l.b16 %v89
  %v170 = vunpack.c.l.b16 %v90
  %v171 = vunpack.c.l.b16 %v91
  %v172 = vunpack.c.l.b16 %v92
  %v173 = vunpack.c.l.b16 %v93
  %v174 = vunpack.c.l.b16 %v94
  %v175 = vunpack.c.l.b16 %v95
  %v176 = vunpack.c.l.b16 %v96
  %v177 = vunpack.c.l.b16 %v97
  %v178 = vunpack.c.l.b16 %v98
  %v179 = vunpack.c.l.b16 %v99
  %v180 = vunpack.c.l.b16 %v100
  %v181 = vunpack.c.l.b16 %v101
  %v182 = vunpack.c.l.b16 %v102
  %v183 = vpack.c.b16 %v168, %v167
  %v184 = vpack.c.b16 %v170, %v169
  %v185 = vpack.c.b16 %v172, %v171
  %v186 = vpack.c.b16 %v174, %v173
  %v187 = vpack.c.b16 %v176, %v175
  %v188 = vpack.c.b16 %v178, %v177
  %v189 = vpack.c.b16 %v180, %v179
  %v190 = vpack.c.b16 %v182, %v181
  %199 = vmatprep.subr.bf16.mxu0 0
  %200 = vmatpush1.bf16.msra.mxu0 %v190
  %201 = vmatprep.subr.bf16.mxu0 0
  %202 = vmatpush1.bf16.msra.mxu0 %v189
  %203 = vmatprep.subr.bf16.mxu0 0
  %204 = vmatpush1.bf16.msra.mxu0 %v188
  %205 = vmatprep.subr.bf16.mxu0 0
  %206 = vmatpush1.bf16.msra.mxu0 %v187
  %207 = vmatprep.subr.bf16.mxu0 0
  %208 = vmatpush1.bf16.msra.mxu0 %v186
  %209 = vmatprep.subr.bf16.mxu0 0
  %210 = vmatpush1.bf16.msra.mxu0 %v185
  %211 = vmatprep.subr.bf16.mxu0 0
  %212 = vmatpush1.bf16.msra.mxu0 %v184
  %213 = vmatprep.subr.bf16.mxu0 0
  %214 = vmatpush1.bf16.msra.mxu0 %v183
  %215 = vmatprep.subr.bf16.mxu0 0
  %216 = vmatpush2.bf16.msra.mxu0 0
  %217 = vmatprep.subr.bf16.mxu0 0
  %218 = vmatpush2.bf16.msra.mxu0 0
  %219 = vmatprep.subr.bf16.mxu0 0
  %220 = vmatpush2.bf16.msra.mxu0 0
  %221 = vmatprep.subr.bf16.mxu0 0
  %222 = vmatpush2.bf16.msra.mxu0 0
  %223 = vmatprep.subr.bf16.mxu0 0
  %224 = vmatpush2.bf16.msra.mxu0 0
  %225 = vmatprep.subr.bf16.mxu0 0
  %226 = vmatpush2.bf16.msra.mxu0 0
  %227 = vmatprep.subr.bf16.mxu0 0
  %228 = vmatpush2.bf16.msra.mxu0 0
  %229 = vmatprep.subr.bf16.mxu0 0
  %230 = vmatpush2.bf16.msra.mxu0 0
  %231 = vmatprep.mubr.bf16.mxu0 0
  %232 = vmatmul.mubr.bf16.gmra.mxu0 %v135
  %v233 = vpop.f32.mrf.mxu0
  %v234 = vadd.f32 0.0, %v233
  %v235 = vpop.f32.mrf.mxu0
  %v236 = vpop.f32.mrf.mxu0
  %v237 = vadd.f32 0.0, %v236
  %v238 = vpop.f32.mrf.mxu0
  %239 = vmatprep.mubr.bf16.mxu0 0
  %240 = vmatmul.mubr.bf16.gmra.mxu0 %v136
  %v241 = vpop.f32.mrf.mxu0
  %v242 = vadd.f32 0.0, %v241
  %v243 = vpop.f32.mrf.mxu0
  %v244 = vpop.f32.mrf.mxu0
  %v245 = vadd.f32 0.0, %v244
  %v246 = vpop.f32.mrf.mxu0
  %247 = vmatprep.mubr.bf16.mxu0 0
  %248 = vmatmul.mubr.bf16.gmra.mxu0 %v137
  %v249 = vpop.f32.mrf.mxu0
  %v250 = vadd.f32 0.0, %v249
  %v251 = vpop.f32.mrf.mxu0
  %v252 = vpop.f32.mrf.mxu0
  %v253 = vadd.f32 0.0, %v252
  %v254 = vpop.f32.mrf.mxu0
  %255 = vmatprep.mubr.bf16.mxu0 0
  %256 = vmatmul.mubr.bf16.gmra.mxu0 %v138
  %v257 = vpop.f32.mrf.mxu0
  %v258 = vadd.f32 0.0, %v257
  %v259 = vpop.f32.mrf.mxu0
  %v260 = vpop.f32.mrf.mxu0
  %v261 = vadd.f32 0.0, %v260
  %v262 = vpop.f32.mrf.mxu0
  %263 = vmatprep.mubr.bf16.mxu0 0
  %264 = vmatmul.mubr.bf16.gmra.mxu0 %v139
  %v265 = vpop.f32.mrf.mxu0
  %v266 = vadd.f32 0.0, %v265
  %v267 = vpop.f32.mrf.mxu0
  %v268 = vpop.f32.mrf.mxu0
  %v269 = vadd.f32 0.0, %v268
  %v270 = vpop.f32.mrf.mxu0
  %271 = vmatprep.mubr.bf16.mxu0 0
  %272 = vmatmul.mubr.bf16.gmra.mxu0 %v140
  %v273 = vpop.f32.mrf.mxu0
  %v274 = vadd.f32 0.0, %v273
  %v275 = vpop.f32.mrf.mxu0
  %v276 = vpop.f32.mrf.mxu0
  %v277 = vadd.f32 0.0, %v276
  %v278 = vpop.f32.mrf.mxu0
  %279 = vmatprep.mubr.bf16.mxu0 0
  %280 = vmatmul.mubr.bf16.gmra.mxu0 %v141
  %v281 = vpop.f32.mrf.mxu0
  %v282 = vadd.f32 0.0, %v281
  %v283 = vpop.f32.mrf.mxu0
  %v284 = vpop.f32.mrf.mxu0
  %v285 = vadd.f32 0.0, %v284
  %v286 = vpop.f32.mrf.mxu0
  %287 = vmatprep.mubr.bf16.mxu0 0
  %288 = vmatmul.mubr.bf16.gmra.mxu0 %v142
  %v289 = vpop.f32.mrf.mxu0
  %v290 = vadd.f32 0.0, %v289
  %v291 = vpop.f32.mrf.mxu0
  %v292 = vpop.f32.mrf.mxu0
  %v293 = vadd.f32 0.0, %v292
  %v294 = vpop.f32.mrf.mxu0
  %295 = vdwg.mxu0
  %v312 = vunpack.c.l.b16 %v71
  %v313 = vunpack.c.l.b16 %v72
  %v314 = vunpack.c.l.b16 %v73
  %v315 = vunpack.c.l.b16 %v74
  %v316 = vunpack.c.l.b16 %v75
  %v317 = vunpack.c.l.b16 %v76
  %v318 = vunpack.c.l.b16 %v77
  %v319 = vunpack.c.l.b16 %v78
  %v320 = vunpack.c.l.b16 %v79
  %v321 = vunpack.c.l.b16 %v80
  %v322 = vunpack.c.l.b16 %v81
  %v323 = vunpack.c.l.b16 %v82
  %v324 = vunpack.c.l.b16 %v83
  %v325 = vunpack.c.l.b16 %v84
  %v326 = vunpack.c.l.b16 %v85
  %v327 = vunpack.c.l.b16 %v86
  %v328 = vpack.c.b16 %v313, %v312
  %v329 = vpack.c.b16 %v315, %v314
  %v330 = vpack.c.b16 %v317, %v316
  %v331 = vpack.c.b16 %v319, %v318
  %v332 = vpack.c.b16 %v321, %v320
  %v333 = vpack.c.b16 %v323, %v322
  %v334 = vpack.c.b16 %v325, %v324
  %v335 = vpack.c.b16 %v327, %v326
  %344 = vmatprep.subr.bf16.mxu0 0
  %345 = vmatpush1.bf16.msra.mxu0 %v335
  %346 = vmatprep.subr.bf16.mxu0 0
  %347 = vmatpush1.bf16.msra.mxu0 %v334
  %348 = vmatprep.subr.bf16.mxu0 0
  %349 = vmatpush1.bf16.msra.mxu0 %v333
  %350 = vmatprep.subr.bf16.mxu0 0
  %351 = vmatpush1.bf16.msra.mxu0 %v332
  %352 = vmatprep.subr.bf16.mxu0 0
  %353 = vmatpush1.bf16.msra.mxu0 %v331
  %354 = vmatprep.subr.bf16.mxu0 0
  %355 = vmatpush1.bf16.msra.mxu0 %v330
  %356 = vmatprep.subr.bf16.mxu0 0
  %357 = vmatpush1.bf16.msra.mxu0 %v329
  %358 = vmatprep.subr.bf16.mxu0 0
  %359 = vmatpush1.bf16.msra.mxu0 %v328
  %360 = vmatprep.subr.bf16.mxu0 0
  %361 = vmatpush2.bf16.msra.mxu0 0
  %362 = vmatprep.subr.bf16.mxu0 0
  %363 = vmatpush2.bf16.msra.mxu0 0
  %364 = vmatprep.subr.bf16.mxu0 0
  %365 = vmatpush2.bf16.msra.mxu0 0
  %366 = vmatprep.subr.bf16.mxu0 0
  %367 = vmatpush2.bf16.msra.mxu0 0
  %368 = vmatprep.subr.bf16.mxu0 0
  %369 = vmatpush2.bf16.msra.mxu0 0
  %370 = vmatprep.subr.bf16.mxu0 0
  %371 = vmatpush2.bf16.msra.mxu0 0
  %372 = vmatprep.subr.bf16.mxu0 0
  %373 = vmatpush2.bf16.msra.mxu0 0
  %374 = vmatprep.subr.bf16.mxu0 0
  %375 = vmatpush2.bf16.msra.mxu0 0
  %376 = vmatprep.mubr.bf16.mxu0 0
  %377 = vmatmul.mubr.bf16.gmra.mxu0 %v135
  %v378 = vpop.f32.mrf.mxu0
  %v379 = vadd.f32 %v234, %v378
  %v380 = vpop.f32.mrf.mxu0
  %v381 = vpop.f32.mrf.mxu0
  %v382 = vadd.f32 %v237, %v381
  %v383 = vpop.f32.mrf.mxu0
  %384 = vmatprep.mubr.bf16.mxu0 0
  %385 = vmatmul.mubr.bf16.gmra.mxu0 %v136
  %v386 = vpop.f32.mrf.mxu0
  %v387 = vadd.f32 %v242, %v386
  %v388 = vpop.f32.mrf.mxu0
  %v389 = vpop.f32.mrf.mxu0
  %v390 = vadd.f32 %v245, %v389
  %v391 = vpop.f32.mrf.mxu0
  %392 = vmatprep.mubr.bf16.mxu0 0
  %393 = vmatmul.mubr.bf16.gmra.mxu0 %v137
  %v394 = vpop.f32.mrf.mxu0
  %v395 = vadd.f32 %v250, %v394
  %v396 = vpop.f32.mrf.mxu0
  %v397 = vpop.f32.mrf.mxu0
  %v398 = vadd.f32 %v253, %v397
  %v399 = vpop.f32.mrf.mxu0
  %400 = vmatprep.mubr.bf16.mxu0 0
  %401 = vmatmul.mubr.bf16.gmra.mxu0 %v138
  %v402 = vpop.f32.mrf.mxu0
  %v403 = vadd.f32 %v258, %v402
  %v404 = vpop.f32.mrf.mxu0
  %v405 = vpop.f32.mrf.mxu0
  %v406 = vadd.f32 %v261, %v405
  %v407 = vpop.f32.mrf.mxu0
  %408 = vmatprep.mubr.bf16.mxu0 0
  %409 = vmatmul.mubr.bf16.gmra.mxu0 %v139
  %v410 = vpop.f32.mrf.mxu0
  %v411 = vadd.f32 %v266, %v410
  %v412 = vpop.f32.mrf.mxu0
  %v413 = vpop.f32.mrf.mxu0
  %v414 = vadd.f32 %v269, %v413
  %v415 = vpop.f32.mrf.mxu0
  %416 = vmatprep.mubr.bf16.mxu0 0
  %417 = vmatmul.mubr.bf16.gmra.mxu0 %v140
  %v418 = vpop.f32.mrf.mxu0
  %v419 = vadd.f32 %v274, %v418
  %v420 = vpop.f32.mrf.mxu0
  %v421 = vpop.f32.mrf.mxu0
  %v422 = vadd.f32 %v277, %v421
  %v423 = vpop.f32.mrf.mxu0
  %424 = vmatprep.mubr.bf16.mxu0 0
  %425 = vmatmul.mubr.bf16.gmra.mxu0 %v141
  %v426 = vpop.f32.mrf.mxu0
  %v427 = vadd.f32 %v282, %v426
  %v428 = vpop.f32.mrf.mxu0
  %v429 = vpop.f32.mrf.mxu0
  %v430 = vadd.f32 %v285, %v429
  %v431 = vpop.f32.mrf.mxu0
  %432 = vmatprep.mubr.bf16.mxu0 0
  %433 = vmatmul.mubr.bf16.gmra.mxu0 %v142
  %v434 = vpop.f32.mrf.mxu0
  %v435 = vadd.f32 %v290, %v434
  %v436 = vpop.f32.mrf.mxu0
  %v437 = vpop.f32.mrf.mxu0
  %v438 = vadd.f32 %v293, %v437
  %v439 = vpop.f32.mrf.mxu0
  %440 = vdwg.mxu0
  %v441 = vadd.f32 %v55, %v379
  %v442 = vadd.f32 %v56, %v382
  %v443 = vadd.f32 %v57, %v387
  %v444 = vadd.f32 %v58, %v390
  %v445 = vadd.f32 %v59, %v395
  %v446 = vadd.f32 %v60, %v398
  %v447 = vadd.f32 %v61, %v403
  %v448 = vadd.f32 %v62, %v406
  %v449 = vadd.f32 %v63, %v411
  %v450 = vadd.f32 %v64, %v414
  %v451 = vadd.f32 %v65, %v419
  %v452 = vadd.f32 %v66, %v422
  %v453 = vadd.f32 %v67, %v427
  %v454 = vadd.f32 %v68, %v430
  %v455 = vadd.f32 %v69, %v435
  %v456 = vadd.f32 %v70, %v438
  %vm457 = vcmask 261120
  %458 = vst.msk [vmem:[#allocation2] sm:$0xff] %vm457, %v441
  %459 = vst.msk [vmem:[#allocation2 + $0x8] sm:$0xff] %vm457, %v442
  %460 = vst.msk [vmem:[#allocation2 + $0x10] sm:$0xff] %vm457, %v443
  %461 = vst.msk [vmem:[#allocation2 + $0x18] sm:$0xff] %vm457, %v444
  %462 = vst.msk [vmem:[#allocation2 + $0x20] sm:$0xff] %vm457, %v445
  %463 = vst.msk [vmem:[#allocation2 + $0x28] sm:$0xff] %vm457, %v446
  %464 = vst.msk [vmem:[#allocation2 + $0x30] sm:$0xff] %vm457, %v447
  %465 = vst.msk [vmem:[#allocation2 + $0x38] sm:$0xff] %vm457, %v448
  %466 = vst.msk [vmem:[#allocation2 + $0x40] sm:$0xff] %vm457, %v449
  %467 = vst.msk [vmem:[#allocation2 + $0x48] sm:$0xff] %vm457, %v450
  %468 = vst.msk [vmem:[#allocation2 + $0x50] sm:$0xff] %vm457, %v451
  %469 = vst.msk [vmem:[#allocation2 + $0x58] sm:$0xff] %vm457, %v452
  %470 = vst.msk [vmem:[#allocation2 + $0x60] sm:$0xff] %vm457, %v453
  %471 = vst.msk [vmem:[#allocation2 + $0x68] sm:$0xff] %vm457, %v454
  %472 = vst.msk [vmem:[#allocation2 + $0x70] sm:$0xff] %vm457, %v455
  %473 = vst.msk [vmem:[#allocation2 + $0x78] sm:$0xff] %vm457, %v456
  // Predicated region
  $region22: #{tpu_custom_call.1} parent=0 // pred_check
    %p474 = pneg %p18
  $region23: #{tpu_custom_call.1} parent=0 // pred_check_branch
    %476 = sbr.rel (%p474) target = $region25
  $region24: #{tpu_custom_call.1} parent=0 // pred_region
    %v477 = vld [vmem:[#allocation2] sm:$0xff]
    %v478 = vld [vmem:[#allocation2 + $0x8] sm:$0xff]
    %v479 = vld [vmem:[#allocation2 + $0x10] sm:$0xff]
    %v480 = vld [vmem:[#allocation2 + $0x18] sm:$0xff]
    %v481 = vld [vmem:[#allocation2 + $0x20] sm:$0xff]
    %v482 = vld [vmem:[#allocation2 + $0x28] sm:$0xff]
    %v483 = vld [vmem:[#allocation2 + $0x30] sm:$0xff]
    %v484 = vld [vmem:[#allocation2 + $0x38] sm:$0xff]
    %v485 = vld [vmem:[#allocation2 + $0x40] sm:$0xff]
    %v486 = vld [vmem:[#allocation2 + $0x48] sm:$0xff]
    %v487 = vld [vmem:[#allocation2 + $0x50] sm:$0xff]
    %v488 = vld [vmem:[#allocation2 + $0x58] sm:$0xff]
    %v489 = vld [vmem:[#allocation2 + $0x60] sm:$0xff]
    %v490 = vld [vmem:[#allocation2 + $0x68] sm:$0xff]
    %v491 = vld [vmem:[#allocation2 + $0x70] sm:$0xff]
    %v492 = vld [vmem:[#allocation2 + $0x78] sm:$0xff]
    %v493 = vmul.f32 %v477, %v477
    %v494 = vmul.f32 %v478, %v478
    %v495 = vmul.f32 %v479, %v479
    %v496 = vmul.f32 %v480, %v480
    %v497 = vmul.f32 %v481, %v481
    %v498 = vmul.f32 %v482, %v482
    %v499 = vmul.f32 %v483, %v483
    %v500 = vmul.f32 %v484, %v484
    %v501 = vmul.f32 %v485, %v485
    %v502 = vmul.f32 %v486, %v486
    %v503 = vmul.f32 %v487, %v487
    %v504 = vmul.f32 %v488, %v488
    %v505 = vmul.f32 %v489, %v489
    %v506 = vmul.f32 %v490, %v490
    %v507 = vmul.f32 %v491, %v491
    %v508 = vmul.f32 %v492, %v492
    %v509 = vpack.c.bf16 %v494, %v493
    %v510 = vpack.c.bf16 %v496, %v495
    %v511 = vpack.c.bf16 %v498, %v497
    %v512 = vpack.c.bf16 %v500, %v499
    %v513 = vpack.c.bf16 %v502, %v501
    %v514 = vpack.c.bf16 %v504, %v503
    %v515 = vpack.c.bf16 %v506, %v505
    %v516 = vpack.c.bf16 %v508, %v507
    %v517 = vunpack.c.l.bf16 %v509
    %v518 = vunpack.c.h.bf16 %v509
    %v519 = vunpack.c.l.bf16 %v510
    %v520 = vunpack.c.h.bf16 %v510
    %v521 = vunpack.c.l.bf16 %v511
    %v522 = vunpack.c.h.bf16 %v511
    %v523 = vunpack.c.l.bf16 %v512
    %v524 = vunpack.c.h.bf16 %v512
    %v525 = vunpack.c.l.bf16 %v513
    %v526 = vunpack.c.h.bf16 %v513
    %v527 = vunpack.c.l.bf16 %v514
    %v528 = vunpack.c.h.bf16 %v514
    %v529 = vunpack.c.l.bf16 %v515
    %v530 = vunpack.c.h.bf16 %v515
    %v531 = vunpack.c.l.bf16 %v516
    %v532 = vunpack.c.h.bf16 %v516
    %v533 = vsub.f32 %v493, %v517
    %v534 = vsub.f32 %v494, %v518
    %v535 = vsub.f32 %v495, %v519
    %v536 = vsub.f32 %v496, %v520
    %v537 = vsub.f32 %v497, %v521
    %v538 = vsub.f32 %v498, %v522
    %v539 = vsub.f32 %v499, %v523
    %v540 = vsub.f32 %v500, %v524
    %v541 = vsub.f32 %v501, %v525
    %v542 = vsub.f32 %v502, %v526
    %v543 = vsub.f32 %v503, %v527
    %v544 = vsub.f32 %v504, %v528
    %v545 = vsub.f32 %v505, %v529
    %v546 = vsub.f32 %v506, %v530
    %v547 = vsub.f32 %v507, %v531
    %v548 = vsub.f32 %v508, %v532
    %v549 = vpack.c.bf16 %v534, %v533
    %v550 = vpack.c.bf16 %v536, %v535
    %v551 = vpack.c.bf16 %v538, %v537
    %v552 = vpack.c.bf16 %v540, %v539
    %v553 = vpack.c.bf16 %v542, %v541
    %v554 = vpack.c.bf16 %v544, %v543
    %v555 = vpack.c.bf16 %v546, %v545
    %v556 = vpack.c.bf16 %v548, %v547
    %v557 = vld [vmem:[%s3] sm:$0xf]
    %v558 = vld [vmem:[%s3 + $0x4] sm:$0xf]
    %v559 = vld [vmem:[%s3 + $0x8] sm:$0xf]
    %v560 = vld [vmem:[%s3 + $0xc] sm:$0xf]
    %v565 = vunpack.c.l.b16 %v557
    %v566 = vunpack.c.l.b16 %v558
    %v567 = vunpack.c.l.b16 %v559
    %v568 = vunpack.c.l.b16 %v560
    %v569 = vpack.c.b16 %v566, %v565
    %v570 = vpack.c.b16 %v568, %v567
    %v574 = vsel %vm457, %v549, 0
    %v577 = vsel %vm457, %v550, 0
    %v580 = vsel %vm457, %v551, 0
    %v583 = vsel %vm457, %v552, 0
    %v586 = vsel %vm457, %v553, 0
    %v589 = vsel %vm457, %v554, 0
    %v592 = vsel %vm457, %v555, 0
    %v595 = vsel %vm457, %v556, 0
    %597 = vmatprep.subr.bf16.mxu0 0
    %598 = vmatpush1.bf16.msra.mxu0 0
    %599 = vmatprep.subr.bf16.mxu0 0
    %600 = vmatpush1.bf16.msra.mxu0 0
    %601 = vmatprep.subr.bf16.mxu0 0
    %602 = vmatpush1.bf16.msra.mxu0 0
    %603 = vmatprep.subr.bf16.mxu0 0
    %604 = vmatpush1.bf16.msra.mxu0 0
    %605 = vmatprep.subr.bf16.mxu0 0
    %606 = vmatpush1.bf16.msra.mxu0 0
    %607 = vmatprep.subr.bf16.mxu0 0
    %608 = vmatpush1.bf16.msra.mxu0 0
    %609 = vmatprep.subr.bf16.mxu0 0
    %610 = vmatpush1.bf16.msra.mxu0 %v570
    %611 = vmatprep.subr.bf16.mxu0 0
    %612 = vmatpush1.bf16.msra.mxu0 %v569
    %613 = vmatprep.subr.bf16.mxu0 0
    %614 = vmatpush2.bf16.msra.mxu0 0
    %615 = vmatprep.subr.bf16.mxu0 0
    %616 = vmatpush2.bf16.msra.mxu0 0
    %617 = vmatprep.subr.bf16.mxu0 0
    %618 = vmatpush2.bf16.msra.mxu0 0
    %619 = vmatprep.subr.bf16.mxu0 0
    %620 = vmatpush2.bf16.msra.mxu0 0
    %621 = vmatprep.subr.bf16.mxu0 0
    %622 = vmatpush2.bf16.msra.mxu0 0
    %623 = vmatprep.subr.bf16.mxu0 0
    %624 = vmatpush2.bf16.msra.mxu0 0
    %625 = vmatprep.subr.bf16.mxu0 0
    %626 = vmatpush2.bf16.msra.mxu0 0
    %627 = vmatprep.subr.bf16.mxu0 0
    %628 = vmatpush2.bf16.msra.mxu0 0
    %629 = vmatprep.mubr.bf16.mxu0 0
    %630 = vmatmul.mubr.bf16.gmra.mxu0 %v574
    %v631 = vpop.f32.mrf.mxu0
    %v632 = vadd.f32 0.0, %v631
    %v633 = vpop.f32.mrf.mxu0
    %v634 = vpop.f32.mrf.mxu0
    %v635 = vadd.f32 0.0, %v634
    %v636 = vpop.f32.mrf.mxu0
    %637 = vmatprep.mubr.bf16.mxu0 0
    %638 = vmatmul.mubr.bf16.gmra.mxu0 %v577
    %v639 = vpop.f32.mrf.mxu0
    %v640 = vadd.f32 0.0, %v639
    %v641 = vpop.f32.mrf.mxu0
    %v642 = vpop.f32.mrf.mxu0
    %v643 = vadd.f32 0.0, %v642
    %v644 = vpop.f32.mrf.mxu0
    %645 = vmatprep.mubr.bf16.mxu0 0
    %646 = vmatmul.mubr.bf16.gmra.mxu0 %v580
    %v647 = vpop.f32.mrf.mxu0
    %v648 = vadd.f32 0.0, %v647
    %v649 = vpop.f32.mrf.mxu0
    %v650 = vpop.f32.mrf.mxu0
    %v651 = vadd.f32 0.0, %v650
    %v652 = vpop.f32.mrf.mxu0
    %653 = vmatprep.mubr.bf16.mxu0 0
    %654 = vmatmul.mubr.bf16.gmra.mxu0 %v583
    %v655 = vpop.f32.mrf.mxu0
    %v656 = vadd.f32 0.0, %v655
    %v657 = vpop.f32.mrf.mxu0
    %v658 = vpop.f32.mrf.mxu0
    %v659 = vadd.f32 0.0, %v658
    %v660 = vpop.f32.mrf.mxu0
    %661 = vmatprep.mubr.bf16.mxu0 0
    %662 = vmatmul.mubr.bf16.gmra.mxu0 %v586
    %v663 = vpop.f32.mrf.mxu0
    %v664 = vadd.f32 0.0, %v663
    %v665 = vpop.f32.mrf.mxu0
    %v666 = vpop.f32.mrf.mxu0
    %v667 = vadd.f32 0.0, %v666
    %v668 = vpop.f32.mrf.mxu0
    %669 = vmatprep.mubr.bf16.mxu0 0
    %670 = vmatmul.mubr.bf16.gmra.mxu0 %v589
    %v671 = vpop.f32.mrf.mxu0
    %v672 = vadd.f32 0.0, %v671
    %v673 = vpop.f32.mrf.mxu0
    %v674 = vpop.f32.mrf.mxu0
    %v675 = vadd.f32 0.0, %v674
    %v676 = vpop.f32.mrf.mxu0
    %677 = vmatprep.mubr.bf16.mxu0 0
    %678 = vmatmul.mubr.bf16.gmra.mxu0 %v592
    %v679 = vpop.f32.mrf.mxu0
    %v680 = vadd.f32 0.0, %v679
    %v681 = vpop.f32.mrf.mxu0
    %v682 = vpop.f32.mrf.mxu0
    %v683 = vadd.f32 0.0, %v682
    %v684 = vpop.f32.mrf.mxu0
    %685 = vmatprep.mubr.bf16.mxu0 0
    %686 = vmatmul.mubr.bf16.gmra.mxu0 %v595
    %v687 = vpop.f32.mrf.mxu0
    %v688 = vadd.f32 0.0, %v687
    %v689 = vpop.f32.mrf.mxu0
    %v690 = vpop.f32.mrf.mxu0
    %v691 = vadd.f32 0.0, %v690
    %v692 = vpop.f32.mrf.mxu0
    %693 = vdwg.mxu0
    %v695 = vsel %vm457, %v509, 0
    %v698 = vsel %vm457, %v510, 0
    %v701 = vsel %vm457, %v511, 0
    %v704 = vsel %vm457, %v512, 0
    %v707 = vsel %vm457, %v513, 0
    %v710 = vsel %vm457, %v514, 0
    %v713 = vsel %vm457, %v515, 0
    %v716 = vsel %vm457, %v516, 0
    %718 = vmatprep.subr.bf16.mxu0 0
    %719 = vmatpush1.bf16.msra.mxu0 0
    %720 = vmatprep.subr.bf16.mxu0 0
    %721 = vmatpush1.bf16.msra.mxu0 0
    %722 = vmatprep.subr.bf16.mxu0 0
    %723 = vmatpush1.bf16.msra.mxu0 0
    %724 = vmatprep.subr.bf16.mxu0 0
    %725 = vmatpush1.bf16.msra.mxu0 0
    %726 = vmatprep.subr.bf16.mxu0 0
    %727 = vmatpush1.bf16.msra.mxu0 0
    %728 = vmatprep.subr.bf16.mxu0 0
    %729 = vmatpush1.bf16.msra.mxu0 0
    %730 = vmatprep.subr.bf16.mxu0 0
    %731 = vmatpush1.bf16.msra.mxu0 %v570
    %732 = vmatprep.subr.bf16.mxu0 0
    %733 = vmatpush1.bf16.msra.mxu0 %v569
    %734 = vmatprep.subr.bf16.mxu0 0
    %735 = vmatpush2.bf16.msra.mxu0 0
    %736 = vmatprep.subr.bf16.mxu0 0
    %737 = vmatpush2.bf16.msra.mxu0 0
    %738 = vmatprep.subr.bf16.mxu0 0
    %739 = vmatpush2.bf16.msra.mxu0 0
    %740 = vmatprep.subr.bf16.mxu0 0
    %741 = vmatpush2.bf16.msra.mxu0 0
    %742 = vmatprep.subr.bf16.mxu0 0
    %743 = vmatpush2.bf16.msra.mxu0 0
    %744 = vmatprep.subr.bf16.mxu0 0
    %745 = vmatpush2.bf16.msra.mxu0 0
    %746 = vmatprep.subr.bf16.mxu0 0
    %747 = vmatpush2.bf16.msra.mxu0 0
    %748 = vmatprep.subr.bf16.mxu0 0
    %749 = vmatpush2.bf16.msra.mxu0 0
    %750 = vmatprep.mubr.bf16.mxu0 0
    %751 = vmatmul.mubr.bf16.gmra.mxu0 %v695
    %v752 = vpop.f32.mrf.mxu0
    %v753 = vadd.f32 %v632, %v752
    %v754 = vpop.f32.mrf.mxu0
    %v755 = vpop.f32.mrf.mxu0
    %v756 = vadd.f32 %v635, %v755
    %v757 = vpop.f32.mrf.mxu0
    %758 = vmatprep.mubr.bf16.mxu0 0
    %759 = vmatmul.mubr.bf16.gmra.mxu0 %v698
    %v760 = vpop.f32.mrf.mxu0
    %v761 = vadd.f32 %v640, %v760
    %v762 = vpop.f32.mrf.mxu0
    %v763 = vpop.f32.mrf.mxu0
    %v764 = vadd.f32 %v643, %v763
    %v765 = vpop.f32.mrf.mxu0
    %766 = vmatprep.mubr.bf16.mxu0 0
    %767 = vmatmul.mubr.bf16.gmra.mxu0 %v701
    %v768 = vpop.f32.mrf.mxu0
    %v769 = vadd.f32 %v648, %v768
    %v770 = vpop.f32.mrf.mxu0
    %v771 = vpop.f32.mrf.mxu0
    %v772 = vadd.f32 %v651, %v771
    %v773 = vpop.f32.mrf.mxu0
    %774 = vmatprep.mubr.bf16.mxu0 0
    %775 = vmatmul.mubr.bf16.gmra.mxu0 %v704
    %v776 = vpop.f32.mrf.mxu0
    %v777 = vadd.f32 %v656, %v776
    %v778 = vpop.f32.mrf.mxu0
    %v779 = vpop.f32.mrf.mxu0
    %v780 = vadd.f32 %v659, %v779
    %v781 = vpop.f32.mrf.mxu0
    %782 = vmatprep.mubr.bf16.mxu0 0
    %783 = vmatmul.mubr.bf16.gmra.mxu0 %v707
    %v784 = vpop.f32.mrf.mxu0
    %v785 = vadd.f32 %v664, %v784
    %v786 = vpop.f32.mrf.mxu0
    %v787 = vpop.f32.mrf.mxu0
    %v788 = vadd.f32 %v667, %v787
    %v789 = vpop.f32.mrf.mxu0
    %790 = vmatprep.mubr.bf16.mxu0 0
    %791 = vmatmul.mubr.bf16.gmra.mxu0 %v710
    %v792 = vpop.f32.mrf.mxu0
    %v793 = vadd.f32 %v672, %v792
    %v794 = vpop.f32.mrf.mxu0
    %v795 = vpop.f32.mrf.mxu0
    %v796 = vadd.f32 %v675, %v795
    %v797 = vpop.f32.mrf.mxu0
    %798 = vmatprep.mubr.bf16.mxu0 0
    %799 = vmatmul.mubr.bf16.gmra.mxu0 %v713
    %v800 = vpop.f32.mrf.mxu0
    %v801 = vadd.f32 %v680, %v800
    %v802 = vpop.f32.mrf.mxu0
    %v803 = vpop.f32.mrf.mxu0
    %v804 = vadd.f32 %v683, %v803
    %v805 = vpop.f32.mrf.mxu0
    %806 = vmatprep.mubr.bf16.mxu0 0
    %807 = vmatmul.mubr.bf16.gmra.mxu0 %v716
    %v808 = vpop.f32.mrf.mxu0
    %v809 = vadd.f32 %v688, %v808
    %v810 = vpop.f32.mrf.mxu0
    %v811 = vpop.f32.mrf.mxu0
    %v812 = vadd.f32 %v691, %v811
    %v813 = vpop.f32.mrf.mxu0
    %814 = vdwg.mxu0
    %v815 = vmax.f32 %v753, 1e-24
    %v816 = vmax.f32 %v756, 1e-24
    %v817 = vmax.f32 %v761, 1e-24
    %v818 = vmax.f32 %v764, 1e-24
    %v819 = vmax.f32 %v769, 1e-24
    %v820 = vmax.f32 %v772, 1e-24
    %v821 = vmax.f32 %v777, 1e-24
    %v822 = vmax.f32 %v780, 1e-24
    %v823 = vmax.f32 %v785, 1e-24
    %v824 = vmax.f32 %v788, 1e-24
    %v825 = vmax.f32 %v793, 1e-24
    %v826 = vmax.f32 %v796, 1e-24
    %v827 = vmax.f32 %v801, 1e-24
    %v828 = vmax.f32 %v804, 1e-24
    %v829 = vmax.f32 %v809, 1e-24
    %v830 = vmax.f32 %v812, 1e-24
    %v831 = vrsqrt.pop %v815
    %v832 = vrsqrt.pop %v816
    %v833 = vrsqrt.pop %v817
    %v834 = vrsqrt.pop %v818
    %v835 = vrsqrt.pop %v819
    %v836 = vrsqrt.pop %v820
    %v837 = vrsqrt.pop %v821
    %v838 = vrsqrt.pop %v822
    %v839 = vrsqrt.pop %v823
    %v840 = vrsqrt.pop %v824
    %v841 = vrsqrt.pop %v825
    %v842 = vrsqrt.pop %v826
    %v843 = vrsqrt.pop %v827
    %v844 = vrsqrt.pop %v828
    %v845 = vrsqrt.pop %v829
    %v846 = vrsqrt.pop %v830
    %v847 = vmul.f32 %v477, %v831
    %v848 = vmul.f32 %v478, %v832
    %v849 = vmul.f32 %v479, %v833
    %v850 = vmul.f32 %v480, %v834
    %v851 = vmul.f32 %v481, %v835
    %v852 = vmul.f32 %v482, %v836
    %v853 = vmul.f32 %v483, %v837
    %v854 = vmul.f32 %v484, %v838
    %v855 = vmul.f32 %v485, %v839
    %v856 = vmul.f32 %v486, %v840
    %v857 = vmul.f32 %v487, %v841
    %v858 = vmul.f32 %v488, %v842
    %v859 = vmul.f32 %v489, %v843
    %v860 = vmul.f32 %v490, %v844
    %v861 = vmul.f32 %v491, %v845
    %v862 = vmul.f32 %v492, %v846
    %863 = vst.msk [vmem:[%s4] sm:$0xff] %vm457, %v847
    %864 = vst.msk [vmem:[%s4 + $0x8] sm:$0xff] %vm457, %v848
    %865 = vst.msk [vmem:[%s4 + $0x10] sm:$0xff] %vm457, %v849
    %866 = vst.msk [vmem:[%s4 + $0x18] sm:$0xff] %vm457, %v850
    %867 = vst.msk [vmem:[%s4 + $0x20] sm:$0xff] %vm457, %v851
    %868 = vst.msk [vmem:[%s4 + $0x28] sm:$0xff] %vm457, %v852
    %869 = vst.msk [vmem:[%s4 + $0x30] sm:$0xff] %vm457, %v853
    %870 = vst.msk [vmem:[%s4 + $0x38] sm:$0xff] %vm457, %v854
    %871 = vst.msk [vmem:[%s4 + $0x40] sm:$0xff] %vm457, %v855
    %872 = vst.msk [vmem:[%s4 + $0x48] sm:$0xff] %vm457, %v856
    %873 = vst.msk [vmem:[%s4 + $0x50] sm:$0xff] %vm457, %v857
    %874 = vst.msk [vmem:[%s4 + $0x58] sm:$0xff] %vm457, %v858
    %875 = vst.msk [vmem:[%s4 + $0x60] sm:$0xff] %vm457, %v859
    %876 = vst.msk [vmem:[%s4 + $0x68] sm:$0xff] %vm457, %v860
    %877 = vst.msk [vmem:[%s4 + $0x70] sm:$0xff] %vm457, %v861
    %878 = vst.msk [vmem:[%s4 + $0x78] sm:$0xff] %vm457, %v862
  $region25: #{tpu_custom_call.1} parent=0 // pred_fallthru
    _
  // Predicated region
  $region26: #{tpu_custom_call.1} parent=0 // pred_check
    _
  $region27: #{tpu_custom_call.1} parent=0 // pred_check_branch
    %880 = sbr.rel (0) target = $region29
  $region28: #{tpu_custom_call.1} parent=0 // pred_region
    _
  $region29: #{tpu_custom_call.1} parent=0 // pred_fallthru
    _
  // Predicated region
  $region30: #{tpu_custom_call.1} parent=0 // pred_check
    _
  $region31: #{tpu_custom_call.1} parent=0 // pred_check_branch
    %882 = sbr.rel (0) target = $region33
  $region32: #{tpu_custom_call.1} parent=0 // pred_region
    _
  $region33: #{tpu_custom_call.1} parent=0 // pred_fallthru
    _

</llo_original>
